<compile_context>
chip_gen: v7x
topology: tpu7x:2x2x1
jax: 0.10.0
libtpu: 0.0.40
codegen_flags: <defaults>
</compile_context>

<pallas_src>
import jax
import jax.numpy as jnp
from jax.experimental import pallas as pl
from jax.experimental.pallas import tpu as pltpu


def _round_up(x, m):
    return ((x + m - 1) // m) * m


def multiquad_rbf_kernel(s_ref, nsq_ref, scal_ref, o_ref):
    # s_ref   : (1, bb)  VMEM row of time points, one per lane (lane-dense).
    # nsq_ref : (D, 1)   VMEM column of (n_range / eps_scales)**2, one per sublane.
    # scal_ref: (3,)     SMEM scalars: [D, 2*sum(centers), sum(centers^2)].
    # o_ref   : (D, bb)  VMEM output tile.
    s = s_ref[...]                                   # (1, bb)
    d_f = scal_ref[0]
    two_sum_c = scal_ref[1]
    sum_c2 = scal_ref[2]

    # r^2 = ||s*1 - centers||_2^2 = D*s^2 - 2*s*sum(c) + sum(c^2)
    # -> two FMAs per lane on the VPU, no cross-lane (XLU) reduction.
    r2 = (d_f * s - two_sum_c) * s + sum_c2          # (1, bb)

    # basis = 1 + sqrt(1 + (r * n_scaled)^2) = 1 + sqrt(1 + r2 * n_sq)
    # One EUP sqrt per output element (r itself is never formed).
    o_ref[...] = 1.0 + jnp.sqrt(1.0 + r2 * nsq_ref[...])   # (D, bb)


def multiquad_rbf(n_range, s, centers, eps_scales, *, max_block_b=32768):
    """Pallas implementation of MultiquadRBF.forward.

    s may be a scalar (exactly the PyTorch forward) or a batch of shape (B,)/(B,1)
    of time points evaluated in a single kernel launch.  Returns a list with one
    array of shape (D,) for scalar s, or (B, D) for batched s.
    """
    n_range = jnp.asarray(n_range, jnp.float32)
    centers = jnp.asarray(centers, jnp.float32)
    eps_scales = jnp.asarray(eps_scales, jnp.float32)
    D = n_range.shape[0]

    # Parameter-only math hoisted out of the kernel (independent of s).
    n_sq = (n_range / eps_scales) ** 2               # (D,)
    n_sq_col = n_sq.reshape(D, 1)                    # sublane-aligned resident column
    scalars = jnp.stack([
        jnp.float32(D),
        2.0 * jnp.sum(centers),
        jnp.sum(centers * centers),
    ]).astype(jnp.float32)                           # (3,) -> SMEM

    s_arr = jnp.asarray(s, jnp.float32)
    scalar_input = s_arr.ndim == 0
    s_row = s_arr.reshape(1, -1)                     # (1, B): batch on the lane axis
    B = s_row.shape[1]

    # Lane-dense blocking.  Small batch: one block.  Large batch: at most two
    # "parallel" blocks (v7x dual-TC sharding); cap lane width so huge batches
    # still use a few-MiB working set.
    B_pad0 = _round_up(B, 128)
    if B_pad0 <= 128:
        bb = 128
    else:
        bb = min(_round_up((B_pad0 + 1) // 2, 128), max_block_b)
    B_pad = _round_up(B_pad0, bb)
    if B_pad != B:
        s_row = jnp.pad(s_row, ((0, 0), (0, B_pad - B)))
    grid = (B_pad // bb,)

    cost = pl.CostEstimate(
        flops=4 * B_pad * D + 4 * B_pad,
        transcendentals=B_pad * D,
        bytes_accessed=4 * (B_pad + D + 3 + B_pad * D),
    )

    out = pl.pallas_call(
        multiquad_rbf_kernel,
        out_shape=jax.ShapeDtypeStruct((D, B_pad), jnp.float32),
        grid=grid,
        in_specs=[
            pl.BlockSpec((1, bb), lambda i: (0, i)),             # time points (per block)
            pl.BlockSpec((D, 1), lambda i: (0, 0)),              # n_sq column (resident)
            pl.BlockSpec(memory_space=pltpu.MemorySpace.SMEM),   # norm scalars
        ],
        out_specs=pl.BlockSpec((D, bb), lambda i: (0, i)),       # lane-dense output
        compiler_params=pltpu.CompilerParams(
            dimension_semantics=("parallel",)),
        cost_estimate=cost,
    )(s_row, n_sq_col, scalars)

    basis = out[:, :B]
    if scalar_input:
        basis = basis.reshape(D)
    else:
        # Present (B, D) to callers; the lane-dense (D, B) slab is kernel-internal
        # layout plumbing.  A fused downstream consumer would keep (D, B) as-is.
        basis = basis.T
    # The PyTorch module returns a Python list with a single basis tensor.
    return [basis]


if __name__ == "__main__":
    deg = 15                       # small eigenbasis degree -> D = 16 basis entries
    D = deg + 1

    # Deterministic parameter init exactly as in __init__(adaptive=True,
    # eps_scales=2, centers=0): centers = 0*ones(deg+1), eps_scales = 2*ones(deg+1).
    centers = 0.0 * jnp.ones((D,), dtype=jnp.float32)
    eps_scales = 2.0 * jnp.ones((D,), dtype=jnp.float32)
    n_range = jnp.arange(D, dtype=jnp.float32)
    n_scaled_ref = n_range / eps_scales

    key = jax.random.PRNGKey(0)
    k1, k2 = jax.random.split(key)

    # --- Scalar s: matches the PyTorch forward exactly. ---
    s_scalar = jax.random.uniform(k1, (), dtype=jnp.float32)
    basis = multiquad_rbf(n_range, s_scalar, centers, eps_scales)
    out_scalar = jax.block_until_ready(basis[0])
    r_ref = jnp.sqrt(jnp.sum((s_scalar - centers) ** 2))
    ref_scalar = 1.0 + jnp.sqrt(1.0 + (r_ref * n_scaled_ref) ** 2)
    assert out_scalar.shape == (D,)
    assert jnp.allclose(out_scalar, ref_scalar, rtol=1e-5, atol=1e-5)

    # --- Batched s: one launch amortized over B solver time points. ---
    B = 8
    s_batch = jax.random.uniform(k2, (B,), dtype=jnp.float32)
    basis_b = multiquad_rbf(n_range, s_batch, centers, eps_scales)
    out_b = jax.block_until_ready(basis_b[0])
    r_b = jnp.sqrt(jnp.sum((s_batch[:, None] - centers[None, :]) ** 2,
                           axis=-1, keepdims=True))                      # (B, 1)
    ref_b = 1.0 + jnp.sqrt(1.0 + (r_b * n_scaled_ref[None, :]) ** 2)     # (B, D)
    assert out_b.shape == (B, D)
    assert jnp.allclose(out_b, ref_b, rtol=1e-5, atol=1e-5)

    print("KERNEL_OK")
</pallas_src>

<mosaic_0001>
module attributes {stable_mosaic.version = 11 : i64} {
  func.func @multiquad_rbf_kernel(%arg0: i32, %arg1: memref<1x128xf32, #tpu.memory_space<vmem>>, %arg2: memref<16x1xf32, #tpu.memory_space<vmem>>, %arg3: memref<3xf32, #tpu.memory_space<smem>>, %arg4: memref<16x128xf32, #tpu.memory_space<vmem>>) attributes {dimension_semantics = [#tpu.dimension_semantics<parallel>], iteration_bounds = array<i64: 1>, scalar_prefetch = 0 : i64, scratch_operands = 0 : i64, tpu.core_type = #tpu.core_type<tc>, window_params = [{transform_indices = @transform_0, window_bounds = array<i64: 1, 128>}, {pipeline_mode = #tpu.pipeline_mode<synchronous>, transform_indices = @transform_1, window_bounds = array<i64: 16, 1>}, {transform_indices = @transform_2, window_bounds = array<i64: 3>}, {transform_indices = @transform_3, window_bounds = array<i64: 16, 128>}]} {
    %c0 = arith.constant 0 : index
    %c0_0 = arith.constant 0 : index
    %0 = vector.load %arg1[%c0, %c0_0] : memref<1x128xf32, #tpu.memory_space<vmem>>, vector<1x128xf32>
    %c0_1 = arith.constant 0 : index
    %1 = memref.load %arg3[%c0_1] : memref<3xf32, #tpu.memory_space<smem>>
    %c1 = arith.constant 1 : index
    %2 = memref.load %arg3[%c1] : memref<3xf32, #tpu.memory_space<smem>>
    %c2 = arith.constant 2 : index
    %3 = memref.load %arg3[%c2] : memref<3xf32, #tpu.memory_space<smem>>
    %4 = vector.broadcast %1 : f32 to vector<1x128xf32>
    %5 = arith.mulf %4, %0 : vector<1x128xf32>
    %6 = vector.broadcast %2 : f32 to vector<1x128xf32>
    %7 = arith.subf %5, %6 : vector<1x128xf32>
    %8 = arith.mulf %7, %0 : vector<1x128xf32>
    %9 = vector.broadcast %3 : f32 to vector<1x128xf32>
    %10 = arith.addf %8, %9 : vector<1x128xf32>
    %c0_2 = arith.constant 0 : index
    %c0_3 = arith.constant 0 : index
    %11 = vector.load %arg2[%c0_2, %c0_3] : memref<16x1xf32, #tpu.memory_space<vmem>>, vector<16x1xf32>
    %12 = vector.broadcast %10 : vector<1x128xf32> to vector<16x128xf32>
    %13 = vector.broadcast %11 : vector<16x1xf32> to vector<16x128xf32>
    %14 = arith.mulf %12, %13 : vector<16x128xf32>
    %cst = arith.constant 1.000000e+00 : f32
    %15 = vector.broadcast %cst : f32 to vector<16x128xf32>
    %16 = arith.addf %15, %14 : vector<16x128xf32>
    %17 = math.sqrt %16 : vector<16x128xf32>
    %cst_4 = arith.constant 1.000000e+00 : f32
    %18 = vector.broadcast %cst_4 : f32 to vector<16x128xf32>
    %19 = arith.addf %18, %17 : vector<16x128xf32>
    %c0_5 = arith.constant 0 : index
    %c0_6 = arith.constant 0 : index
    %20 = vector.load %arg4[%c0_5, %c0_6] : memref<16x128xf32, #tpu.memory_space<vmem>>, vector<16x128xf32>
    tpu.vector_store %arg4[%c0_5, %c0_6], %19 {strides = array<i32>} : memref<16x128xf32, #tpu.memory_space<vmem>>, vector<16x128xf32>,
    return
  }
  func.func @transform_0(%arg0: i32) -> (i32, i32) {
    %c0_i32 = arith.constant 0 : i32
    %c0_i32_0 = arith.constant 0 : i32
    return %c0_i32, %arg0 : i32, i32
  }
  func.func @transform_1(%arg0: i32) -> (i32, i32) {
    %c0_i32 = arith.constant 0 : i32
    %c0_i32_0 = arith.constant 0 : i32
    %c0_i32_1 = arith.constant 0 : i32
    return %c0_i32, %c0_i32_0 : i32, i32
  }
  func.func @transform_2(%arg0: i32) -> i32 {
    %c0_i32 = arith.constant 0 : i32
    %c0_i32_0 = arith.constant 0 : i32
    return %c0_i32 : i32
  }
  func.func @transform_3(%arg0: i32) -> (i32, i32) {
    %c0_i32 = arith.constant 0 : i32
    %c0_i32_0 = arith.constant 0 : i32
    return %c0_i32, %arg0 : i32, i32
  }
}

</mosaic_0001>

<llo_original>
// kernel: tpu_custom_call.1
$region0: #{tpu_custom_call.1}
  #allocation0 [shape = 'u32[]', space=smem, size = 0x4, offset = 0x4, fixed_abs, tag = 'smem constant byte address 0x4 - core index']
  #allocation1 [shape = 'u32[144,128]{1,0:T(1,128)}', space=vmem, size = 0x12000, scoped, tag = 'internal scratch']
  %s0 = inlined_call_operand.vmem [shape: f32[1,128], index: 0, kind: input, shape index: {}]
  %s1 = inlined_call_operand.vmem [shape: f32[16,1], index: 1, kind: input, shape index: {}]
  %s2 = inlined_call_operand.vmem [shape: f32[3], index: 2, kind: input, shape index: {}]
  %s3 = inlined_call_operand.hbm [shape: f32[16,128], index: 3, kind: output, shape index: {}]
  %s4 = sld [smem:[#allocation0]]
  $region26: #{tpu_custom_call.1} parent=0
    _
  %s6 = ssub.s32 1, %s4
  %s7 = scalar_select 0, %s6, %s4
  $region1: #{tpu_custom_call.1} parent=0
    #allocation2 [shape = 'u8[512]{0}', space=smem, size = 0x200, scoped, tag = 'input window, operand 2, single buffered']
    #allocation3 [shape = 's32[1]{0}', space=sflag, size = 0x4, scoped, tag = 'scoped memory for tpu_custom_call.1']
    #allocation4 [shape = 's32[1]{0}', space=sflag, size = 0x4, scoped, tag = 'scoped memory for tpu_custom_call.1']
    #allocation5 [shape = 'u8[8192]{0}', space=vmem, size = 0x2000, scoped, tag = 'output window, operand 0, single buffered']
    %8 = vsyncpa [#allocation4], 0
    %9 = vsyncpa [#allocation3], 0
    // Predicated region
    $region2: #{tpu_custom_call.1} parent=1 // pred_check
      _
    $region3: #{tpu_custom_call.1} parent=1 // pred_check_branch
      %11 = sbr.rel (0) target = $region5
    $region4: #{tpu_custom_call.1} parent=1 // pred_region
      _
    $region5: #{tpu_custom_call.1} parent=1 // pred_fallthru
      _
    // Predicated region
    $region6: #{tpu_custom_call.1} parent=1 // pred_check
      _
    $region7: #{tpu_custom_call.1} parent=1 // pred_check_branch
      %13 = sbr.rel (0) target = $region9
    $region8: #{tpu_custom_call.1} parent=1 // pred_region
      _
    $region9: #{tpu_custom_call.1} parent=1 // pred_fallthru
      _
    // Predicated region
    $region10: #{tpu_custom_call.1} parent=1 // pred_check
      _
    $region11: #{tpu_custom_call.1} parent=1 // pred_check_branch
      %15 = sbr.rel (0) target = $region13
    $region12: #{tpu_custom_call.1} parent=1 // pred_region
      %s17 = ssub.s32 16, 16
      %18 = vsyncadd [#allocation4], %s17
      %s20 = sshll.u32 %s2, 4
      %s21 = int_to_ptr.vmem [resolvable:$true] %s20
      %23 = dma.vmem_to_smem %s21, 16, [#allocation2], [#allocation4]
    $region13: #{tpu_custom_call.1} parent=1 // pred_fallthru
      _
    // Predicated region
    $region14: #{tpu_custom_call.1} parent=1 // pred_check
      _
    $region15: #{tpu_custom_call.1} parent=1 // pred_check_branch
      %25 = sbr.rel (0) target = $region17
    $region16: #{tpu_custom_call.1} parent=1 // pred_region
      %26 = dma.done [#allocation4], 16
    $region17: #{tpu_custom_call.1} parent=1 // pred_fallthru
      _
    %27 = sfence
    %v28 = vld [vmem:[%s0] sm:$0x1]
    %s29 = sld [smem:[#allocation2]]
    %s30 = sld [smem:[#allocation2 + $0x1]]
    %s31 = sld [smem:[#allocation2 + $0x2]]
    %v32 = vstv %s29
    %v33 = vmul.f32 %v32, %v28
    %v34 = vstv %s30
    %v35 = vsub.f32 %v33, %v34
    %v36 = vmul.f32 %v35, %v28
    %v37 = vstv %s31
    %v38 = vadd.f32 %v36, %v37
    %v39 = vld [vmem:[%s1] sm:$0xff]
    %v40 = vld [vmem:[%s1 + $0x8] sm:$0xff]
    %v42 = vlaneseq
    %v43 = vshrl.u32 %v42, 7
    %v44 = vsub.s32 0, %v43
    %v45 = vrot.slane %v38, %v44
    %48 = vset.pattern.permute.xlu0 0
    %49 = vperm.xlu0 %48, %v39
    %v50 = vpop.permute.xlu0 %49
    %53 = vset.pattern.permute.xlu0 0
    %54 = vperm.xlu0 %53, %v40
    %v55 = vpop.permute.xlu0 %54
    %v57 = vmul.f32 %v45, %v50
    %v58 = vmul.f32 %v45, %v55
    %v59 = vadd.f32 %v57, 1.0
    %v60 = vadd.f32 %v58, 1.0
    %v61 = vrsqrt.pop %v59
    %v62 = vmul.f32 %v59, %v61
    %vm63 = vcmp.eq.f32.partialorder %v59, inf
    %v64 = vsel %vm63, %v59, %v62
    %vm65 = vcmp.eq.f32.partialorder %v59, 0.0
    %v66 = vand.u32 %v59, 2147483648
    %v67 = vsel %vm65, %v66, %v64
    %v68 = vrsqrt.pop %v60
    %v69 = vmul.f32 %v60, %v68
    %vm70 = vcmp.eq.f32.partialorder %v60, inf
    %v71 = vsel %vm70, %v60, %v69
    %vm72 = vcmp.eq.f32.partialorder %v60, 0.0
    %v73 = vand.u32 %v60, 2147483648
    %v74 = vsel %vm72, %v73, %v71
    %v75 = vadd.f32 %v67, 1.0
    %v76 = vadd.f32 %v74, 1.0
    %77 = vst [vmem:[#allocation5] sm:$0xff] %v75
    %78 = vst [vmem:[#allocation5 + $0x8] sm:$0xff] %v76
    // Predicated region
    $region18: #{tpu_custom_call.1} parent=1 // pred_check
      _
    $region19: #{tpu_custom_call.1} parent=1 // pred_check_branch
      %80 = sbr.rel (0) target = $region21
    $region20: #{tpu_custom_call.1} parent=1 // pred_region
      %s82 = ssub.s32 256, 256
      %83 = vsyncadd [#allocation3], %s82
      %s84 = sshll.u32 [#allocation5], 4
      %s85 = int_to_ptr.vmem [resolvable:$true] %s84
      %90 = dma.vmem_to_hbm [thread:$0]  %s85, 256, %s3, [#allocation3], 128, 128, 8
    $region21: #{tpu_custom_call.1} parent=1 // pred_fallthru
      _
    // Predicated region
    $region22: #{tpu_custom_call.1} parent=1 // pred_check
      _
    $region23: #{tpu_custom_call.1} parent=1 // pred_check_branch
      %92 = sbr.rel (0) target = $region25
    $region24: #{tpu_custom_call.1} parent=1 // pred_region
      %93 = dma.done [#allocation3], 256
    $region25: #{tpu_custom_call.1} parent=1 // pred_fallthru
      _
    %94 = vsyncpa [#allocation3], 1
    %95 = vsyncpa [#allocation4], 1

</llo_original>
